<compile_context>
chip_gen: v6e
topology: v6e:2x2x1
jax: 0.10.0
libtpu: 0.0.40
codegen_flags: <defaults>
</compile_context>

<pallas_src>
import jax
import jax.numpy as jnp
from jax.experimental import pallas as pl
from jax.experimental.pallas import tpu as pltpu


def _se_kernel(x_ref, w1t_ref, b1_ref, w2t_ref, o_ref):
    # x_ref / o_ref: (TB, C, HW) in the input dtype (channels-first, HW on lanes)
    # w1t_ref: (C, E) f32  BN-folded squeeze weight, pre-transposed
    # b1_ref:  (1, E) f32  BN-folded bias
    # w2t_ref: (E, C) f32  excite weight, pre-transposed
    #
    # Read x_ref separately for the pooled reduction and the final rescale so a
    # multi-MB tile value isn't held live across the squeeze/excite math
    # (re-reading the pipelined VMEM buffer is free; it isn't recycled until
    # the body finishes).
    pooled = jnp.mean(x_ref[...], axis=2, dtype=jnp.float32)            # (TB, C)

    # Squeeze 1x1 conv with folded BatchNorm, then ReLU.
    h = jnp.dot(pooled, w1t_ref[...], preferred_element_type=jnp.float32)
    h = jnp.maximum(h + b1_ref[...], 0.0)                               # (TB, E)

    # Excite 1x1 conv.
    s = jnp.dot(h, w2t_ref[...], preferred_element_type=jnp.float32)    # (TB, C)

    # Hardsigmoid: clip(s/6 + 0.5, 0, 1) -- multiply, never divide.
    scale = jnp.clip(s * (1.0 / 6.0) + 0.5, 0.0, 1.0)

    # NOTE: for bf16 inputs the scale is cast to the input dtype before the
    # multiply (reference multiplies in f32 then casts); divergence is within
    # normal tolerance and keeps the big elementwise multiply in the input
    # dtype (this op is HBM-bound, not compute-bound).
    o_ref[...] = x_ref[...] * scale.astype(o_ref.dtype)[:, :, None]


def _vmem_limit_bytes():
    """Pick vmem_limit_bytes from the actual chip's VMEM capacity."""
    try:
        cap = pltpu.get_tpu_info().vmem_capacity_bytes
    except Exception:  # pragma: no cover - conservative fallback
        cap = 64 << 20
    if cap <= (64 << 20):
        # v7x: 64 MiB physical; leave headroom for compiler scratch, weights
        # and f32 temporaries.
        return 42 << 20
    # v5e/v6e: 128 MiB physical; well above the 16/32 MiB scoped defaults so
    # larger batch tiles (fewer grid steps, less per-step overhead) are legal.
    return 96 << 20


def se_module(x, w1, w2, bn_params, *, eps=1e-5, donate_input=False):
    """SE forward. x: (B, C, H, W) NCHW.  w1: (E, C), w2: (C, E), bn_params: (4, E)."""
    B, C, H, W = x.shape
    HW = H * W
    E = w1.shape[0]
    itemsize = jnp.dtype(x.dtype).itemsize

    # ---- Fold BatchNorm into the squeeze conv; pre-transpose both weights. ----
    gamma, beta, mean, var = bn_params[0], bn_params[1], bn_params[2], bn_params[3]
    inv = gamma.astype(jnp.float32) * jax.lax.rsqrt(var.astype(jnp.float32) + eps)
    w1t = (w1.astype(jnp.float32) * inv[:, None]).T                      # (C, E)
    b1 = (beta.astype(jnp.float32) - mean.astype(jnp.float32) * inv).reshape(1, E)
    w2t = w2.astype(jnp.float32).T                                       # (E, C)

    # ---- Always channels-first (B, C, HW): a free reshape, no HBM transposes. ----
    x_flat = x.reshape(B, C, HW)

    # Padded per-batch-element VMEM tile bytes with the dtype-correct sublane
    # quantum (f32: 8, bf16: 16, int8/fp8: 32 -- sub-32-bit packs along sublanes).
    sub_q = max(8, 32 // itemsize)
    per_elem = (-(-C // sub_q) * sub_q) * (-(-HW // 128) * 128) * itemsize

    vmem_limit = _vmem_limit_bytes()
    budget = max(4 * per_elem, vmem_limit - (8 << 20))  # room for weights/temps

    # ---- Batch tile: ~3 steps per TensorCore, >= ~512 KiB per step if possible,
    #      and at least one grid step per TC on v7x when B >= 2. ----
    num_cores = 2                    # assume megacore (v7x); harmless on 1-TC chips
    target_steps = 3 * num_cores
    step_floor_bytes = 512 << 10

    tb_max = max(1, budget // (4 * per_elem))        # 2x double-buffered in + out
    tb_steps = -(-B // target_steps)                 # tile giving ~target_steps steps
    tb_floor = -(-step_floor_bytes // per_elem)      # tile meeting the data floor
    tb = min(B, tb_max, max(tb_steps, tb_floor))
    tb = min(tb, -(-B // min(B, num_cores)))         # >=1 step per TC when B allows
    tb = max(tb, 1)
    grid = (pl.cdiv(B, tb),)
    # TODO(synk): when B == 1 on v7x this is a single-step grid; splitting into a
    # pool+matmul stage plus an HW-tiled rescale stage would keep both TCs busy.

    x_spec = pl.BlockSpec((tb, C, HW), lambda b: (b, 0, 0))
    w1t_spec = pl.BlockSpec((C, E), lambda b: (0, 0))   # resident across grid steps
    b1_spec = pl.BlockSpec((1, E), lambda b: (0, 0))
    w2t_spec = pl.BlockSpec((E, C), lambda b: (0, 0))

    param_bytes = (w1t.size + w2t.size + b1.size) * 4
    cost = pl.CostEstimate(
        flops=4 * B * C * E + 4 * B * C * HW,
        transcendentals=0,
        bytes_accessed=2 * B * C * HW * itemsize + param_bytes,
    )

    out_flat = pl.pallas_call(
        _se_kernel,
        out_shape=jax.ShapeDtypeStruct(x_flat.shape, x.dtype),
        grid=grid,
        in_specs=[x_spec, w1t_spec, b1_spec, w2t_spec],
        out_specs=x_spec,
        compiler_params=pltpu.CompilerParams(
            dimension_semantics=("parallel",),
            vmem_limit_bytes=vmem_limit,
        ),
        cost_estimate=cost,
        input_output_aliases=({0: 0} if donate_input else {}),
    )(x_flat, w1t, b1, w2t)

    return out_flat.reshape(B, C, H, W)


def se_module_ref(x, w1, w2, bn_params, eps=1e-5):
    """Pure-JAX reference for validation."""
    gamma, beta, mean, var = bn_params
    pooled = jnp.mean(x.astype(jnp.float32), axis=(2, 3))               # (B, C)
    h = pooled @ w1.astype(jnp.float32).T
    h = (h - mean) * jax.lax.rsqrt(var + eps) * gamma + beta
    h = jnp.maximum(h, 0.0)
    s = h @ w2.astype(jnp.float32).T
    scale = jnp.clip(s / 6.0 + 0.5, 0.0, 1.0)
    return (x * scale[:, :, None, None]).astype(x.dtype)


if __name__ == "__main__":
    def run_case(key, B, C, H, W):
        in_size = C
        expand_size = max(in_size // 4, 8)
        kx, k1, k2, kbn = jax.random.split(key, 4)
        x = jax.random.normal(kx, (B, C, H, W), dtype=jnp.float32)
        w1 = jax.random.normal(k1, (expand_size, in_size), dtype=jnp.float32) * 0.5
        w2 = jax.random.normal(k2, (in_size, expand_size), dtype=jnp.float32) * 0.5
        gamma = jnp.ones((expand_size,), jnp.float32) * 1.1
        beta = jnp.ones((expand_size,), jnp.float32) * 0.05
        running_mean = jax.random.normal(kbn, (expand_size,), dtype=jnp.float32) * 0.1
        running_var = jnp.ones((expand_size,), jnp.float32) * 0.9
        bn_params = jnp.stack([gamma, beta, running_mean, running_var], axis=0)  # (4, E)

        out = jax.block_until_ready(se_module(x, w1, w2, bn_params))
        ref = se_module_ref(x, w1, w2, bn_params)
        assert out.shape == (B, C, H, W)
        err = float(jnp.max(jnp.abs(out - ref)))
        assert jnp.allclose(out, ref, atol=1e-5, rtol=1e-5), f"max abs err {err}"
        return out

    key = jax.random.PRNGKey(0)
    k_small, k_mobile = jax.random.split(key)
    # Small test shape (HW=256 on the lane axis).
    run_case(k_small, 2, 4, 16, 16)
    # MobileNet-like SE shape (HW=49 < 128 lanes, larger C -> masked lane stores,
    # but still strictly cheaper than any wrapper-side relayout).
    run_case(k_mobile, 2, 64, 7, 7)

    print("KERNEL_OK")
</pallas_src>

<mosaic_0001>
module attributes {stable_mosaic.version = 11 : i64} {
  func.func @_se_kernel(%arg0: i32, %arg1: memref<1x4x256xf32, #tpu.memory_space<vmem>>, %arg2: memref<4x8xf32, #tpu.memory_space<vmem>>, %arg3: memref<1x8xf32, #tpu.memory_space<vmem>>, %arg4: memref<8x4xf32, #tpu.memory_space<vmem>>, %arg5: memref<1x4x256xf32, #tpu.memory_space<vmem>>) attributes {dimension_semantics = [#tpu.dimension_semantics<parallel>], iteration_bounds = array<i64: 2>, scalar_prefetch = 0 : i64, scratch_operands = 0 : i64, tpu.core_type = #tpu.core_type<tc>, window_params = [{transform_indices = @transform_0, window_bounds = array<i64: 1, 4, 256>}, {pipeline_mode = #tpu.pipeline_mode<synchronous>, transform_indices = @transform_1, window_bounds = array<i64: 4, 8>}, {pipeline_mode = #tpu.pipeline_mode<synchronous>, transform_indices = @transform_2, window_bounds = array<i64: 1, 8>}, {pipeline_mode = #tpu.pipeline_mode<synchronous>, transform_indices = @transform_3, window_bounds = array<i64: 8, 4>}, {transform_indices = @transform_4, window_bounds = array<i64: 1, 4, 256>}]} {
    %c0 = arith.constant 0 : index
    %c0_0 = arith.constant 0 : index
    %c0_1 = arith.constant 0 : index
    %0 = vector.load %arg1[%c0, %c0_0, %c0_1] : memref<1x4x256xf32, #tpu.memory_space<vmem>>, vector<1x4x256xf32>
    %cst = arith.constant dense<0.000000e+00> : vector<1x4xf32>
    %1 = vector.multi_reduction <add>, %0, %cst [2] : vector<1x4x256xf32> to vector<1x4xf32>
    %cst_2 = arith.constant 2.560000e+02 : f32
    %2 = vector.broadcast %cst_2 : f32 to vector<1x4xf32>
    %3 = arith.divf %1, %2 : vector<1x4xf32>
    %c0_3 = arith.constant 0 : index
    %c0_4 = arith.constant 0 : index
    %4 = vector.load %arg2[%c0_3, %c0_4] : memref<4x8xf32, #tpu.memory_space<vmem>>, vector<4x8xf32>
    %cst_5 = arith.constant dense<0.000000e+00> : vector<1x8xf32>
    %5 = tpu.matmul %3, %4, %cst_5 {dimension_numbers = #tpu.dot_dimension_numbers<[1], [0], [0], [1], [0, 0, 1, 1], [], []>} : vector<1x4xf32>, vector<4x8xf32>, vector<1x8xf32> -> vector<1x8xf32>
    %c0_6 = arith.constant 0 : index
    %c0_7 = arith.constant 0 : index
    %6 = vector.load %arg3[%c0_6, %c0_7] : memref<1x8xf32, #tpu.memory_space<vmem>>, vector<1x8xf32>
    %7 = arith.addf %5, %6 : vector<1x8xf32>
    %cst_8 = arith.constant 0.000000e+00 : f32
    %8 = vector.broadcast %cst_8 : f32 to vector<1x8xf32>
    %9 = arith.maximumf %7, %8 : vector<1x8xf32>
    %c0_9 = arith.constant 0 : index
    %c0_10 = arith.constant 0 : index
    %10 = vector.load %arg4[%c0_9, %c0_10] : memref<8x4xf32, #tpu.memory_space<vmem>>, vector<8x4xf32>
    %cst_11 = arith.constant dense<0.000000e+00> : vector<1x4xf32>
    %11 = tpu.matmul %9, %10, %cst_11 {dimension_numbers = #tpu.dot_dimension_numbers<[1], [0], [0], [1], [0, 0, 1, 1], [], []>} : vector<1x8xf32>, vector<8x4xf32>, vector<1x4xf32> -> vector<1x4xf32>
    %cst_12 = arith.constant 0.166666672 : f32
    %12 = vector.broadcast %cst_12 : f32 to vector<1x4xf32>
    %13 = arith.mulf %11, %12 : vector<1x4xf32>
    %cst_13 = arith.constant 5.000000e-01 : f32
    %14 = vector.broadcast %cst_13 : f32 to vector<1x4xf32>
    %15 = arith.addf %13, %14 : vector<1x4xf32>
    %cst_14 = arith.constant 0.000000e+00 : f32
    %cst_15 = arith.constant 1.000000e+00 : f32
    %16 = vector.broadcast %cst_14 : f32 to vector<1x4xf32>
    %17 = arith.maximumf %16, %15 : vector<1x4xf32>
    %18 = vector.broadcast %cst_15 : f32 to vector<1x4xf32>
    %19 = arith.minimumf %18, %17 : vector<1x4xf32>
    %c0_16 = arith.constant 0 : index
    %c0_17 = arith.constant 0 : index
    %c0_18 = arith.constant 0 : index
    %20 = vector.load %arg1[%c0_16, %c0_17, %c0_18] : memref<1x4x256xf32, #tpu.memory_space<vmem>>, vector<1x4x256xf32>
    %21 = vector.shape_cast %19 : vector<1x4xf32> to vector<1x4x1xf32>
    %22 = vector.broadcast %21 : vector<1x4x1xf32> to vector<1x4x256xf32>
    %23 = arith.mulf %20, %22 : vector<1x4x256xf32>
    %c0_19 = arith.constant 0 : index
    %c0_20 = arith.constant 0 : index
    %c0_21 = arith.constant 0 : index
    %24 = vector.load %arg5[%c0_19, %c0_20, %c0_21] : memref<1x4x256xf32, #tpu.memory_space<vmem>>, vector<1x4x256xf32>
    tpu.vector_store %arg5[%c0_19, %c0_20, %c0_21], %23 {strides = array<i32>} : memref<1x4x256xf32, #tpu.memory_space<vmem>>, vector<1x4x256xf32>,
    return
  }
  func.func @transform_0(%arg0: i32) -> (i32, i32, i32) {
    %c0_i32 = arith.constant 0 : i32
    %c0_i32_0 = arith.constant 0 : i32
    %c0_i32_1 = arith.constant 0 : i32
    return %arg0, %c0_i32, %c0_i32_0 : i32, i32, i32
  }
  func.func @transform_1(%arg0: i32) -> (i32, i32) {
    %c0_i32 = arith.constant 0 : i32
    %c0_i32_0 = arith.constant 0 : i32
    %c0_i32_1 = arith.constant 0 : i32
    return %c0_i32, %c0_i32_0 : i32, i32
  }
  func.func @transform_2(%arg0: i32) -> (i32, i32) {
    %c0_i32 = arith.constant 0 : i32
    %c0_i32_0 = arith.constant 0 : i32
    %c0_i32_1 = arith.constant 0 : i32
    return %c0_i32, %c0_i32_0 : i32, i32
  }
  func.func @transform_3(%arg0: i32) -> (i32, i32) {
    %c0_i32 = arith.constant 0 : i32
    %c0_i32_0 = arith.constant 0 : i32
    %c0_i32_1 = arith.constant 0 : i32
    return %c0_i32, %c0_i32_0 : i32, i32
  }
  func.func @transform_4(%arg0: i32) -> (i32, i32, i32) {
    %c0_i32 = arith.constant 0 : i32
    %c0_i32_0 = arith.constant 0 : i32
    %c0_i32_1 = arith.constant 0 : i32
    return %arg0, %c0_i32, %c0_i32_0 : i32, i32, i32
  }
}

</mosaic_0001>

<llo_original>
// kernel: tpu_custom_call.1
$region0: #{tpu_custom_call.1}
  #allocation0 [shape = 'u32[]', space=smem, size = 0x4, offset = 0x4, fixed_abs, tag = 'smem constant byte address 0x4 - core index']
  #allocation1 [shape = 'u32[144,128]{1,0:T(1,128)}', space=vmem, size = 0x12000, scoped, tag = 'internal scratch']
  %s0 = inlined_call_operand.hbm [shape: f32[2,4,256], index: 0, kind: input, shape index: {}]
  %s1 = inlined_call_operand.vmem [shape: f32[4,8], index: 1, kind: input, shape index: {}]
  %s2 = inlined_call_operand.vmem [shape: f32[1,8], index: 2, kind: input, shape index: {}]
  %s3 = inlined_call_operand.vmem [shape: f32[8,4], index: 3, kind: input, shape index: {}]
  %s4 = inlined_call_operand.hbm [shape: f32[2,4,256], index: 4, kind: output, shape index: {}]
  %s5 = sld [smem:[#allocation0]]
  $region53: #{tpu_custom_call.1} parent=0
    _
  %s7 = ssub.s32 1, %s5
  %s8 = scalar_select 0, %s7, %s5
  $region1: #{tpu_custom_call.1} parent=0
    #allocation2 [shape = 'u8[8192]{0}', space=vmem, size = 0x2000, scoped, tag = 'input window, operand 0']
    #allocation3 [shape = 's32[2]{0}', space=sflag, size = 0x8, scoped, tag = 'scoped memory for tpu_custom_call.1']
    #allocation4 [shape = 's32[2]{0}', space=sflag, size = 0x8, scoped, tag = 'scoped memory for tpu_custom_call.1']
    #allocation5 [shape = 'u8[8192]{0}', space=vmem, size = 0x2000, scoped, tag = 'output window, operand 0']
    %9 = vsyncpa [#allocation3], 0
    %s10 = scalar_lea.sflag [#allocation3], 1
    %11 = vsyncpa %s10, 0
    %12 = vsyncpa [#allocation4], 0
    %s13 = scalar_lea.sflag [#allocation4], 1
    %14 = vsyncpa %s13, 0
    loop: start=0, step=1, limit=4
    $region2: #{tpu_custom_call.1} parent=1 // loop_pre_header
      _
    $region3: #{tpu_custom_call.1} parent=1 // loop_header
      %s16 = sphi 0, %s20
      %p17 = scmp.ge.s32.totalorder %s16, 4
      %s26 = sphi 0, %s28
      %s29 = sphi 0, %s26
      %s30 = sphi 0, %s29
      %s46 = sphi 0, %s30
      %s50 = sphi 0, %s50
      %s52 = sphi 0, %s50
      %s53 = sphi 0, %s52
      %s67 = sphi 0, %s53
      %s71 = sphi 0, %s71
      %s73 = sphi 0, %s71
      %s74 = sphi 0, %s73
      %s88 = sphi 0, %s74
      %s92 = sphi 0, %s92
      %s94 = sphi 0, %s92
      %s95 = sphi 0, %s94
      %s109 = sphi 0, %s95
      %s115 = sphi 0, %s117
      %s118 = sphi 0, %s115
      %s119 = sphi 0, %s118
      %s135 = sphi 0, %s119
    $region4: #{tpu_custom_call.1} parent=1 // loop_header_branch
      %19 = sbr.rel (%p17) target = $region8
    $region5: #{tpu_custom_call.1} parent=1 // loop_body
      %s21 = ssub.s32 %s16, 1
      %s22 = ssub.s32 %s16, 2
      %s23 = sadd.s32 %s16, 1
      %s24 = ssub.s32 %s16, %s23
      %p25 = scmp.eq.s32.totalorder %s24, 0
      %s27 = sadd.s32 %s26, 1
      %s28 = scalar_select %p25, %s26, %s27
      %p31 = pneg %p25
      %p32 = scmp.eq.s32.totalorder %s16, 1
      %p33 = por %p31, %p32
      %p34 = scmp.ne.s32.totalorder %s26, %s29
      %p35 = scmp.eq.s32.totalorder %s16, 0
      %p36 = por %p34, %p35
      %p37 = scmp.ne.s32.totalorder %s26, %s29
      %p38 = scmp.eq.s32.totalorder %s21, 1
      %p39 = por %p37, %p38
      %p40 = scmp.ne.s32.totalorder %s29, %s30
      %p41 = scmp.eq.s32.totalorder %s21, 0
      %p42 = por %p40, %p41
      %p43 = scmp.ne.s32.totalorder %s29, %s30
      %p44 = scmp.eq.s32.totalorder %s22, 1
      %p45 = por %p43, %p44
      %p47 = scmp.ne.s32.totalorder %s30, %s46
      %p48 = scmp.eq.s32.totalorder %s22, 0
      %p49 = por %p47, %p48
      %s51 = sadd.s32 %s50, 1
      %p54 = scmp.eq.s32.totalorder %s16, 1
      %p55 = scmp.ne.s32.totalorder %s50, %s52
      %p56 = scmp.eq.s32.totalorder %s16, 0
      %p57 = por %p55, %p56
      %p58 = scmp.ne.s32.totalorder %s50, %s52
      %p59 = scmp.eq.s32.totalorder %s21, 1
      %p60 = por %p58, %p59
      %p61 = scmp.ne.s32.totalorder %s52, %s53
      %p62 = scmp.eq.s32.totalorder %s21, 0
      %p63 = por %p61, %p62
      %p64 = scmp.ne.s32.totalorder %s52, %s53
      %p65 = scmp.eq.s32.totalorder %s22, 1
      %p66 = por %p64, %p65
      %p68 = scmp.ne.s32.totalorder %s53, %s67
      %p69 = scmp.eq.s32.totalorder %s22, 0
      %p70 = por %p68, %p69
      %s72 = sadd.s32 %s71, 1
      %p75 = scmp.eq.s32.totalorder %s16, 1
      %p76 = scmp.ne.s32.totalorder %s71, %s73
      %p77 = scmp.eq.s32.totalorder %s16, 0
      %p78 = por %p76, %p77
      %p79 = scmp.ne.s32.totalorder %s71, %s73
      %p80 = scmp.eq.s32.totalorder %s21, 1
      %p81 = por %p79, %p80
      %p82 = scmp.ne.s32.totalorder %s73, %s74
      %p83 = scmp.eq.s32.totalorder %s21, 0
      %p84 = por %p82, %p83
      %p85 = scmp.ne.s32.totalorder %s73, %s74
      %p86 = scmp.eq.s32.totalorder %s22, 1
      %p87 = por %p85, %p86
      %p89 = scmp.ne.s32.totalorder %s74, %s88
      %p90 = scmp.eq.s32.totalorder %s22, 0
      %p91 = por %p89, %p90
      %s93 = sadd.s32 %s92, 1
      %p96 = scmp.eq.s32.totalorder %s16, 1
      %p97 = scmp.ne.s32.totalorder %s92, %s94
      %p98 = scmp.eq.s32.totalorder %s16, 0
      %p99 = por %p97, %p98
      %p100 = scmp.ne.s32.totalorder %s92, %s94
      %p101 = scmp.eq.s32.totalorder %s21, 1
      %p102 = por %p100, %p101
      %p103 = scmp.ne.s32.totalorder %s94, %s95
      %p104 = scmp.eq.s32.totalorder %s21, 0
      %p105 = por %p103, %p104
      %p106 = scmp.ne.s32.totalorder %s94, %s95
      %p107 = scmp.eq.s32.totalorder %s22, 1
      %p108 = por %p106, %p107
      %p110 = scmp.ne.s32.totalorder %s95, %s109
      %p111 = scmp.eq.s32.totalorder %s22, 0
      %p112 = por %p110, %p111
      %s113 = ssub.s32 %s16, %s23
      %p114 = scmp.eq.s32.totalorder %s113, 0
      %s116 = sadd.s32 %s115, 1
      %s117 = scalar_select %p114, %s115, %s116
      %p120 = pneg %p114
      %p121 = scmp.eq.s32.totalorder %s16, 1
      %p122 = por %p120, %p121
      %p123 = scmp.ne.s32.totalorder %s115, %s118
      %p124 = scmp.eq.s32.totalorder %s16, 0
      %p125 = por %p123, %p124
      %p126 = scmp.ne.s32.totalorder %s115, %s118
      %p127 = scmp.eq.s32.totalorder %s21, 1
      %p128 = por %p126, %p127
      %p129 = scmp.ne.s32.totalorder %s118, %s119
      %p130 = scmp.eq.s32.totalorder %s21, 0
      %p131 = por %p129, %p130
      %p132 = scmp.ne.s32.totalorder %s118, %s119
      %p133 = scmp.eq.s32.totalorder %s22, 1
      %p134 = por %p132, %p133
      %p136 = scmp.ne.s32.totalorder %s119, %s135
      %p137 = scmp.eq.s32.totalorder %s22, 0
      %p138 = por %p136, %p137
      %p139 = scmp.le.s32.totalorder 1, %s16
      %p140 = scmp.lt.s32.totalorder %s16, 3
      %p141 = pnand %p139, %p140
      %p142 = pneg %p141
      // Predicated region
      $region9: #{tpu_custom_call.1} parent=5 // pred_check
        _
      $region10: #{tpu_custom_call.1} parent=5 // pred_check_branch
        %144 = sbr.rel (%p141) target = $region12
      $region11: #{tpu_custom_call.1} parent=5 // pred_region
        %s145 = ssub.s32 %s16, 1
        // Predicated region
        $region13: #{tpu_custom_call.1} parent=11 // pred_check
          %p146 = pneg %p63
        $region14: #{tpu_custom_call.1} parent=11 // pred_check_branch
          %148 = sbr.rel (%p146) target = $region16
        $region15: #{tpu_custom_call.1} parent=11 // pred_region
          _
        $region16: #{tpu_custom_call.1} parent=11 // pred_fallthru
          _
        // Predicated region
        $region17: #{tpu_custom_call.1} parent=11 // pred_check
          %p149 = pneg %p84
        $region18: #{tpu_custom_call.1} parent=11 // pred_check_branch
          %151 = sbr.rel (%p149) target = $region20
        $region19: #{tpu_custom_call.1} parent=11 // pred_region
          _
        $region20: #{tpu_custom_call.1} parent=11 // pred_fallthru
          _
        // Predicated region
        $region21: #{tpu_custom_call.1} parent=11 // pred_check
          %p152 = pneg %p105
        $region22: #{tpu_custom_call.1} parent=11 // pred_check_branch
          %154 = sbr.rel (%p152) target = $region24
        $region23: #{tpu_custom_call.1} parent=11 // pred_region
          _
        $region24: #{tpu_custom_call.1} parent=11 // pred_fallthru
          _
      $region12: #{tpu_custom_call.1} parent=5 // pred_fallthru
        _
      %p155 = scmp.lt.s32.totalorder %s16, 2
      // Predicated region
      $region25: #{tpu_custom_call.1} parent=5 // pred_check
        %p156 = pneg %p155
      $region26: #{tpu_custom_call.1} parent=5 // pred_check_branch
        %158 = sbr.rel (%p156) target = $region28
      $region27: #{tpu_custom_call.1} parent=5 // pred_region
        // Predicated region
        $region29: #{tpu_custom_call.1} parent=27 // pred_check
          %p159 = pneg %p36
        $region30: #{tpu_custom_call.1} parent=27 // pred_check_branch
          %161 = sbr.rel (%p159) target = $region32
        $region31: #{tpu_custom_call.1} parent=27 // pred_region
          %s162 = sand.u32 %s26, 1
          %s163 = scalar_lea.sflag [#allocation3], %s162
          %s164 = sand.u32 %s26, 1
          %s165 = smul.addr %s164, 8
          %s166 = scalar_lea.vmem [#allocation2], %s165
          %s168 = ssub.s32 128, 128
          %169 = vsyncadd %s163, %s168
          %s170 = smul.addr %s16, 2
          %s171 = smul.addr %s170, 64
          %s172 = scalar_lea.hbm %s0, %s171
          %s174 = sshll.u32 %s166, 4
          %s175 = int_to_ptr.vmem [resolvable:$true] %s174
          %177 = dma.hbm_to_vmem [thread:$0]  %s172, 128, %s175, %s163
        $region32: #{tpu_custom_call.1} parent=27 // pred_fallthru
          _
      $region28: #{tpu_custom_call.1} parent=5 // pred_fallthru
        _
      %p178 = scmp.le.s32.totalorder 1, %s16
      %p179 = scmp.lt.s32.totalorder %s16, 3
      %p180 = pnand %p178, %p179
      %p181 = pneg %p180
      // Predicated region
      $region33: #{tpu_custom_call.1} parent=5 // pred_check
        _
      $region34: #{tpu_custom_call.1} parent=5 // pred_check_branch
        %183 = sbr.rel (%p180) target = $region36
      $region35: #{tpu_custom_call.1} parent=5 // pred_region
        %s184 = ssub.s32 %s16, 1
        %s185 = sand.u32 %s29, 1
        %s186 = scalar_lea.sflag [#allocation3], %s185
        %s187 = sand.u32 %s29, 1
        %s188 = smul.addr %s187, 8
        %s189 = scalar_lea.vmem [#allocation2], %s188
        // Predicated region
        $region37: #{tpu_custom_call.1} parent=35 // pred_check
          %p190 = pneg %p42
        $region38: #{tpu_custom_call.1} parent=35 // pred_check_branch
          %192 = sbr.rel (%p190) target = $region40
        $region39: #{tpu_custom_call.1} parent=35 // pred_region
          %193 = dma.done %s186, 128
        $region40: #{tpu_custom_call.1} parent=35 // pred_fallthru
          _
        %s194 = sand.u32 %s29, 1
        %s195 = scalar_lea.sflag [#allocation3], %s194
        %s196 = sand.u32 %s29, 1
        %s197 = smul.addr %s196, 8
        %s198 = scalar_lea.vmem [#allocation2], %s197
        %p199 = pneg %p42
        %p200 = pneg %p39
        %p201 = pneg %p63
        %p202 = pneg %p60
        %p203 = pneg %p84
        %p204 = pneg %p81
        %p205 = pneg %p105
        %p206 = pneg %p102
        %p207 = pneg %p131
        %p208 = pneg %p128
        %s209 = sand.u32 %s118, 1
        %s210 = scalar_lea.sflag [#allocation4], %s209
        %s211 = sand.u32 %s118, 1
        %s212 = smul.addr %s211, 8
        %s213 = scalar_lea.vmem [#allocation5], %s212
        %v214 = vld [vmem:[%s189] sm:$0xff]
        %v216 = vcombine.high %v214, %v214
        %vm218 = vcmask 1043456
        %v219 = vsel %vm218, %v214, 0.0
        %v220 = vsel %vm218, %v216, 0.0
        %v221 = vadd.f32 %v219, %v220
        %222 = vadd.xlane.f32.xlu0 %v221
        %v223 = vpop.xlane.xlu0 %222
        %v224 = vrcp.pop 256.0
        %v225 = vmul.f32 %v223, %v224
        %v226 = vld [vmem:[%s1] sm:$0xf]
        %v227 = vld [vmem:[%s2] sm:$0x1]
        %v229 = vlaneseq
        %v230 = vand.u32 %v229, 127
        %v231 = vlaneseq
        %v232 = vshrl.u32 %v231, 7
        %v233 = vsub.s32 %v230, %v232
        %v234 = vrot.slane %v225, %v233
        %vm235 = vcmask 31744
        %v236 = vsel %vm235, %v234, 0
        %v239 = vsel %vm218, %v226, 0
        %241 = vmatprep.subr.mxu0 0.0
        %242 = vmatpush1.msra.mxu0 0.0
        %243 = vmatprep.subr.mxu0 0.0
        %244 = vmatpush1.msra.mxu0 0.0
        %245 = vmatprep.subr.mxu0 0.0
        %246 = vmatpush1.msra.mxu0 0.0
        %247 = vmatprep.subr.mxu0 0.0
        %248 = vmatpush1.msra.mxu0 0.0
        %249 = vmatprep.subr.mxu0 0.0
        %250 = vmatpush1.msra.mxu0 0.0
        %251 = vmatprep.subr.mxu0 0.0
        %252 = vmatpush1.msra.mxu0 0.0
        %253 = vmatprep.subr.mxu0 0.0
        %254 = vmatpush1.msra.mxu0 0.0
        %255 = vmatprep.subr.mxu0 0.0
        %256 = vmatpush1.msra.mxu0 0.0
        %257 = vmatprep.subr.mxu0 0.0
        %258 = vmatpush1.msra.mxu0 0.0
        %259 = vmatprep.subr.mxu0 0.0
        %260 = vmatpush1.msra.mxu0 0.0
        %261 = vmatprep.subr.mxu0 0.0
        %262 = vmatpush1.msra.mxu0 0.0
        %263 = vmatprep.subr.mxu0 0.0
        %264 = vmatpush1.msra.mxu0 0.0
        %265 = vmatprep.subr.mxu0 0.0
        %266 = vmatpush1.msra.mxu0 0.0
        %267 = vmatprep.subr.mxu0 0.0
        %268 = vmatpush1.msra.mxu0 0.0
        %269 = vmatprep.subr.mxu0 0.0
        %270 = vmatpush1.msra.mxu0 0.0
        %271 = vmatprep.subr.mxu0 0.0
        %272 = vmatpush1.msra.mxu0 %v239
        %273 = vmatprep.subr.mxu0 0.0
        %274 = vmatpush2.msra.mxu0 0.0
        %275 = vmatprep.subr.mxu0 0.0
        %276 = vmatpush2.msra.mxu0 0.0
        %277 = vmatprep.subr.mxu0 0.0
        %278 = vmatpush2.msra.mxu0 0.0
        %279 = vmatprep.subr.mxu0 0.0
        %280 = vmatpush2.msra.mxu0 0.0
        %281 = vmatprep.subr.mxu0 0.0
        %282 = vmatpush2.msra.mxu0 0.0
        %283 = vmatprep.subr.mxu0 0.0
        %284 = vmatpush2.msra.mxu0 0.0
        %285 = vmatprep.subr.mxu0 0.0
        %286 = vmatpush2.msra.mxu0 0.0
        %287 = vmatprep.subr.mxu0 0.0
        %288 = vmatpush2.msra.mxu0 0.0
        %289 = vmatprep.subr.mxu0 0.0
        %290 = vmatpush2.msra.mxu0 0.0
        %291 = vmatprep.subr.mxu0 0.0
        %292 = vmatpush2.msra.mxu0 0.0
        %293 = vmatprep.subr.mxu0 0.0
        %294 = vmatpush2.msra.mxu0 0.0
        %295 = vmatprep.subr.mxu0 0.0
        %296 = vmatpush2.msra.mxu0 0.0
        %297 = vmatprep.subr.mxu0 0.0
        %298 = vmatpush2.msra.mxu0 0.0
        %299 = vmatprep.subr.mxu0 0.0
        %300 = vmatpush2.msra.mxu0 0.0
        %301 = vmatprep.subr.mxu0 0.0
        %302 = vmatpush2.msra.mxu0 0.0
        %303 = vmatprep.subr.mxu0 0.0
        %304 = vmatpush2.msra.mxu0 0.0
        %305 = vmatprep.mubr.f32.mxu0 0.0
        %306 = vmatmul.mubr.f32.gmra.mxu0 %v236
        %v307 = vpop.f32.mrf.mxu0
        %v308 = vadd.f32 %v227, %v307
        %v309 = vpop.f32.mrf.mxu0
        %310 = vdwg.mxu0
        %v311 = vmax.f32 %v308, 0.0
        %v312 = vld [vmem:[%s3] sm:$0xff]
        %vm313 = vcmask 64512
        %v315 = vsel %vm313, %v311, 0
        %317 = vmatprep.subr.mxu0 0.0
        %318 = vmatpush1.msra.mxu0 0.0
        %319 = vmatprep.subr.mxu0 0.0
        %320 = vmatpush1.msra.mxu0 0.0
        %321 = vmatprep.subr.mxu0 0.0
        %322 = vmatpush1.msra.mxu0 0.0
        %323 = vmatprep.subr.mxu0 0.0
        %324 = vmatpush1.msra.mxu0 0.0
        %325 = vmatprep.subr.mxu0 0.0
        %326 = vmatpush1.msra.mxu0 0.0
        %327 = vmatprep.subr.mxu0 0.0
        %328 = vmatpush1.msra.mxu0 0.0
        %329 = vmatprep.subr.mxu0 0.0
        %330 = vmatpush1.msra.mxu0 0.0
        %331 = vmatprep.subr.mxu0 0.0
        %332 = vmatpush1.msra.mxu0 0.0
        %333 = vmatprep.subr.mxu0 0.0
        %334 = vmatpush1.msra.mxu0 0.0
        %335 = vmatprep.subr.mxu0 0.0
        %336 = vmatpush1.msra.mxu0 0.0
        %337 = vmatprep.subr.mxu0 0.0
        %338 = vmatpush1.msra.mxu0 0.0
        %339 = vmatprep.subr.mxu0 0.0
        %340 = vmatpush1.msra.mxu0 0.0
        %341 = vmatprep.subr.mxu0 0.0
        %342 = vmatpush1.msra.mxu0 0.0
        %343 = vmatprep.subr.mxu0 0.0
        %344 = vmatpush1.msra.mxu0 0.0
        %345 = vmatprep.subr.mxu0 0.0
        %346 = vmatpush1.msra.mxu0 0.0
        %347 = vmatprep.subr.mxu0 0.0
        %348 = vmatpush1.msra.mxu0 %v312
        %349 = vmatprep.subr.mxu0 0.0
        %350 = vmatpush2.msra.mxu0 0.0
        %351 = vmatprep.subr.mxu0 0.0
        %352 = vmatpush2.msra.mxu0 0.0
        %353 = vmatprep.subr.mxu0 0.0
        %354 = vmatpush2.msra.mxu0 0.0
        %355 = vmatprep.subr.mxu0 0.0
        %356 = vmatpush2.msra.mxu0 0.0
        %357 = vmatprep.subr.mxu0 0.0
        %358 = vmatpush2.msra.mxu0 0.0
        %359 = vmatprep.subr.mxu0 0.0
        %360 = vmatpush2.msra.mxu0 0.0
        %361 = vmatprep.subr.mxu0 0.0
        %362 = vmatpush2.msra.mxu0 0.0
        %363 = vmatprep.subr.mxu0 0.0
        %364 = vmatpush2.msra.mxu0 0.0
        %365 = vmatprep.subr.mxu0 0.0
        %366 = vmatpush2.msra.mxu0 0.0
        %367 = vmatprep.subr.mxu0 0.0
        %368 = vmatpush2.msra.mxu0 0.0
        %369 = vmatprep.subr.mxu0 0.0
        %370 = vmatpush2.msra.mxu0 0.0
        %371 = vmatprep.subr.mxu0 0.0
        %372 = vmatpush2.msra.mxu0 0.0
        %373 = vmatprep.subr.mxu0 0.0
        %374 = vmatpush2.msra.mxu0 0.0
        %375 = vmatprep.subr.mxu0 0.0
        %376 = vmatpush2.msra.mxu0 0.0
        %377 = vmatprep.subr.mxu0 0.0
        %378 = vmatpush2.msra.mxu0 0.0
        %379 = vmatprep.subr.mxu0 0.0
        %380 = vmatpush2.msra.mxu0 0.0
        %381 = vmatprep.mubr.f32.mxu0 0.0
        %382 = vmatmul.mubr.f32.gmra.mxu0 %v315
        %v383 = vpop.f32.mrf.mxu0
        %v384 = vadd.f32 0.0, %v383
        %v385 = vpop.f32.mrf.mxu0
        %386 = vdwg.mxu0
        %v387 = vmul.f32 %v384, 0.16666667
        %v388 = vadd.f32 %v387, 0.5
        %v389 = vmax.f32 %v388, 0.0
        %v390 = vmin.f32 %v389, 1.0
        %v391 = vlaneseq
        %v392 = vshrl.u32 %v391, 7
        %v393 = vsub.s32 0, %v392
        %v394 = vrot.slane %v390, %v393
        %396 = vbcast.lane.b32.xlu0 %v394, 256
        %v397 = vpop.permute.xlu0 %396
        %v400 = vunpack.c.l.s4 839922192
        %v401 = vunpack.c.0.s8 %v400
        %v402 = vlaneseq
        %v403 = vshrl.u32 %v402, 7
        %v404 = vsub.s32 %v401, %v403
        %v405 = vrot.slane %v397, %v404
        %v407 = vmul.f32 %v214, %v405
        %408 = vst [vmem:[%s213] sm:$0xff] %v407
        %s409 = sand.u32 %s118, 1
        %s410 = scalar_lea.sflag [#allocation4], %s409
        %s411 = sand.u32 %s118, 1
        %s412 = smul.addr %s411, 8
        %s413 = scalar_lea.vmem [#allocation5], %s412
        // Predicated region
        $region41: #{tpu_custom_call.1} parent=35 // pred_check
          %p414 = pneg %p128
        $region42: #{tpu_custom_call.1} parent=35 // pred_check_branch
          %416 = sbr.rel (%p414) target = $region44
        $region43: #{tpu_custom_call.1} parent=35 // pred_region
          %s418 = ssub.s32 128, 128
          %419 = vsyncadd %s410, %s418
          %s420 = smul.addr %s21, 2
          %s421 = smul.addr %s420, 64
          %s422 = scalar_lea.hbm %s4, %s421
          %s424 = sshll.u32 %s413, 4
          %s425 = int_to_ptr.vmem [resolvable:$true] %s424
          %427 = dma.vmem_to_hbm [thread:$0]  %s425, 128, %s422, %s410
        $region44: #{tpu_custom_call.1} parent=35 // pred_fallthru
          _
      $region36: #{tpu_custom_call.1} parent=5 // pred_fallthru
        _
      %p428 = scmp.le.s32.totalorder 2, %s16
      // Predicated region
      $region45: #{tpu_custom_call.1} parent=5 // pred_check
        %p429 = pneg %p428
      $region46: #{tpu_custom_call.1} parent=5 // pred_check_branch
        %431 = sbr.rel (%p429) target = $region48
      $region47: #{tpu_custom_call.1} parent=5 // pred_region
        %s432 = ssub.s32 %s16, 2
        // Predicated region
        $region49: #{tpu_custom_call.1} parent=47 // pred_check
          %p433 = pneg %p134
        $region50: #{tpu_custom_call.1} parent=47 // pred_check_branch
          %435 = sbr.rel (%p433) target = $region52
        $region51: #{tpu_custom_call.1} parent=47 // pred_region
          %s436 = sand.u32 %s119, 1
          %s437 = scalar_lea.sflag [#allocation4], %s436
          %s438 = sand.u32 %s119, 1
          %s439 = smul.addr %s438, 8
          %s440 = scalar_lea.vmem [#allocation5], %s439
          %441 = dma.done %s437, 128
        $region52: #{tpu_custom_call.1} parent=47 // pred_fallthru
          _
      $region48: #{tpu_custom_call.1} parent=5 // pred_fallthru
        _
    $region6: #{tpu_custom_call.1} parent=1 // loop_footer
      %s20 = sadd.s32 1, %s16
    $region7: #{tpu_custom_call.1} parent=1 // loop_footer_branch
      %15 = sbr.rel target = $region3
    $region8: #{tpu_custom_call.1} parent=1 // loop_exit
      _
    %442 = vsyncpa [#allocation3], 1
    %s443 = scalar_lea.sflag [#allocation3], 1
    %444 = vsyncpa %s443, 1
    %445 = vsyncpa [#allocation4], 1
    %s446 = scalar_lea.sflag [#allocation4], 1
    %447 = vsyncpa %s446, 1

</llo_original>
